<compile_context>
chip_gen: v6e
topology: v6e:2x2x1
jax: 0.10.0
libtpu: 0.0.40
codegen_flags: <defaults>
</compile_context>

<pallas_src>
import jax
import jax.numpy as jnp
from jax.experimental import pallas as pl
from jax.experimental.pallas import tpu as pltpu


def attention_mlp_kernel(x_ref, w1_ref, b1_ref, wa_ref, w2_ref, b2_ref, out_ref):
    TB, S, D = x_ref.shape
    H = w1_ref.shape[1]

    # ---- fc1 + relu on a batched (TB*S, D) LHS (fills MXU sublanes) ----
    # NOTE: the reshape is a trivial relabel for f32 with S % 8 == 0; if bf16
    # feeds are adopted, keep S a multiple of 16 or pre-flatten in the wrapper.
    x2 = x_ref[...].reshape(TB * S, D)
    h = jnp.dot(x2, w1_ref[...], preferred_element_type=jnp.float32)
    h = jnp.maximum(h + b1_ref[...], 0.0)        # (TB*S, H)
    h3 = h.reshape(TB, S, H)                     # (TB, S, H)

    # ---- attention logits on the VPU (mul + lane reduce), not the MXU ----
    wa_row = wa_ref[...].reshape(1, 1, H)                     # (1, 1, H)
    logits = jnp.sum(h3 * wa_row, axis=-1, keepdims=True)     # (TB, S, 1)
    # Attention bias omitted: softmax over seq is shift-invariant, so adding a
    # scalar to every logit is a mathematical no-op (bit-identical result).

    # ---- softmax over seq, normalization deferred until after pooling ----
    m = jnp.max(logits, axis=1, keepdims=True)                # (TB, 1, 1)
    e = jnp.exp(logits - m)                                   # (TB, S, 1)
    denom = jnp.sum(e, axis=1, keepdims=True)                 # (TB, 1, 1)

    # ---- weighted sum over seq (unnormalized), then one per-row scale ----
    pooled_un = jnp.sum(h3 * e, axis=1)                       # (TB, H)
    inv = pl.reciprocal(denom.reshape(TB, 1), approx=True)    # (TB, 1), EUP slot
    pooled = pooled_un * inv                                  # (TB, H)

    # ---- fc2 ----
    out = jnp.dot(pooled, w2_ref[...], preferred_element_type=jnp.float32)
    out_ref[...] = out + b2_ref[...]                          # (TB, C)


def _choose_block_batch(B, S, target_rows=256):
    """Largest per-step batch tile dividing B with ~target_rows (batch*seq) MXU
    LHS rows per step.  No '>= 2 steps' forcing: at tiny sizes a single grid
    step avoids per-step pipeline overhead entirely."""
    tb = max(1, min(B, max(1, target_rows // max(S, 1))))
    while B % tb:
        tb -= 1
    return tb


def attention_mlp(x, w1, b1, wa, ba, w2, b2, *, block_batch=None):
    del ba  # softmax shift-invariance: the attention bias never affects the output
    B, S, D = x.shape
    H = w1.shape[1]
    C = w2.shape[1]
    TB = block_batch if block_batch is not None else _choose_block_batch(B, S)
    assert B % TB == 0, (B, TB)

    # Present the attention weight as a lane-major row (done in XLA, free).
    wa_row = wa.reshape(1, H)

    return pl.pallas_call(
        attention_mlp_kernel,
        out_shape=jax.ShapeDtypeStruct((B, C), jnp.float32),
        grid=(B // TB,),
        in_specs=[
            pl.BlockSpec((TB, S, D), lambda b: (b, 0, 0)),   # x (TB rows/step)
            pl.BlockSpec((D, H),     lambda b: (0, 0)),      # fc1 weight (resident)
            pl.BlockSpec((1, H),     lambda b: (0, 0)),      # fc1 bias
            pl.BlockSpec((1, H),     lambda b: (0, 0)),      # attention weight row
            pl.BlockSpec((H, C),     lambda b: (0, 0)),      # fc2 weight (resident)
            pl.BlockSpec((1, C),     lambda b: (0, 0)),      # fc2 bias
        ],
        out_specs=pl.BlockSpec((TB, C), lambda b: (b, 0)),
        compiler_params=pltpu.CompilerParams(
            dimension_semantics=("parallel",)),
    )(x, w1, b1, wa_row, w2, b2)


def reference(x, w1, b1, wa, ba, w2, b2):
    h = jax.nn.relu(x @ w1 + b1)                       # (B, S, H)
    logits = h @ wa + ba                               # (B, S, 1)
    attn = jax.nn.softmax(logits, axis=1)              # softmax over seq
    pooled = jnp.sum(h * attn, axis=1)                 # (B, H)
    return pooled @ w2 + b2                            # (B, C)


if __name__ == "__main__":
    # batch, seq, input_dim, hidden_dim, num_classes
    B, S, D, H, C = 4, 8, 16, 32, 8

    key = jax.random.PRNGKey(0)
    kx, k1, k2, k3, k4, k5, k6 = jax.random.split(key, 7)

    x  = jax.random.normal(kx, (B, S, D), dtype=jnp.float32)
    # nn.Linear weights stored transposed so the kernel does x @ W.
    w1 = jax.random.normal(k1, (D, H), dtype=jnp.float32) * 0.1
    b1 = jax.random.normal(k2, (1, H), dtype=jnp.float32) * 0.1
    wa = jax.random.normal(k3, (H, 1), dtype=jnp.float32) * 0.1
    ba = jax.random.normal(k4, (1, 1), dtype=jnp.float32) * 0.1
    w2 = jax.random.normal(k5, (H, C), dtype=jnp.float32) * 0.1
    b2 = jax.random.normal(k6, (1, C), dtype=jnp.float32) * 0.1

    out = attention_mlp(x, w1, b1, wa, ba, w2, b2)
    out = jax.block_until_ready(out)

    ref = reference(x, w1, b1, wa, ba, w2, b2)
    assert out.shape == (B, C)
    # Tolerance loosened slightly for pl.reciprocal(approx=True) in the softmax.
    assert jnp.allclose(out, ref, atol=2e-3, rtol=2e-3), (out, ref)

    print("KERNEL_OK")
</pallas_src>

<mosaic_0001>
module attributes {stable_mosaic.version = 11 : i64} {
  func.func @attention_mlp_kernel(%arg0: i32, %arg1: memref<4x8x16xf32, #tpu.memory_space<vmem>>, %arg2: memref<16x32xf32, #tpu.memory_space<vmem>>, %arg3: memref<1x32xf32, #tpu.memory_space<vmem>>, %arg4: memref<1x32xf32, #tpu.memory_space<vmem>>, %arg5: memref<32x8xf32, #tpu.memory_space<vmem>>, %arg6: memref<1x8xf32, #tpu.memory_space<vmem>>, %arg7: memref<4x8xf32, #tpu.memory_space<vmem>>) attributes {dimension_semantics = [#tpu.dimension_semantics<parallel>], iteration_bounds = array<i64: 1>, scalar_prefetch = 0 : i64, scratch_operands = 0 : i64, tpu.core_type = #tpu.core_type<tc>, window_params = [{transform_indices = @transform_0, window_bounds = array<i64: 4, 8, 16>}, {pipeline_mode = #tpu.pipeline_mode<synchronous>, transform_indices = @transform_1, window_bounds = array<i64: 16, 32>}, {pipeline_mode = #tpu.pipeline_mode<synchronous>, transform_indices = @transform_2, window_bounds = array<i64: 1, 32>}, {pipeline_mode = #tpu.pipeline_mode<synchronous>, transform_indices = @transform_3, window_bounds = array<i64: 1, 32>}, {pipeline_mode = #tpu.pipeline_mode<synchronous>, transform_indices = @transform_4, window_bounds = array<i64: 32, 8>}, {pipeline_mode = #tpu.pipeline_mode<synchronous>, transform_indices = @transform_5, window_bounds = array<i64: 1, 8>}, {transform_indices = @transform_6, window_bounds = array<i64: 4, 8>}]} {
    %c0 = arith.constant 0 : index
    %c0_0 = arith.constant 0 : index
    %c0_1 = arith.constant 0 : index
    %0 = vector.load %arg1[%c0, %c0_0, %c0_1] : memref<4x8x16xf32, #tpu.memory_space<vmem>>, vector<4x8x16xf32>
    %1 = vector.shape_cast %0 : vector<4x8x16xf32> to vector<32x16xf32>
    %c0_2 = arith.constant 0 : index
    %c0_3 = arith.constant 0 : index
    %2 = vector.load %arg2[%c0_2, %c0_3] : memref<16x32xf32, #tpu.memory_space<vmem>>, vector<16x32xf32>
    %cst = arith.constant dense<0.000000e+00> : vector<32x32xf32>
    %3 = tpu.matmul %1, %2, %cst {dimension_numbers = #tpu.dot_dimension_numbers<[1], [0], [0], [1], [0, 0, 1, 1], [], []>} : vector<32x16xf32>, vector<16x32xf32>, vector<32x32xf32> -> vector<32x32xf32>
    %c0_4 = arith.constant 0 : index
    %c0_5 = arith.constant 0 : index
    %4 = vector.load %arg3[%c0_4, %c0_5] : memref<1x32xf32, #tpu.memory_space<vmem>>, vector<1x32xf32>
    %5 = vector.broadcast %4 : vector<1x32xf32> to vector<32x32xf32>
    %6 = arith.addf %3, %5 : vector<32x32xf32>
    %cst_6 = arith.constant 0.000000e+00 : f32
    %7 = vector.broadcast %cst_6 : f32 to vector<32x32xf32>
    %8 = arith.maximumf %6, %7 : vector<32x32xf32>
    %9 = vector.shape_cast %8 : vector<32x32xf32> to vector<4x8x32xf32>
    %c0_7 = arith.constant 0 : index
    %c0_8 = arith.constant 0 : index
    %10 = vector.load %arg4[%c0_7, %c0_8] : memref<1x32xf32, #tpu.memory_space<vmem>>, vector<1x32xf32>
    %11 = vector.shape_cast %10 : vector<1x32xf32> to vector<1x1x32xf32>
    %12 = vector.broadcast %11 : vector<1x1x32xf32> to vector<4x8x32xf32>
    %13 = arith.mulf %9, %12 : vector<4x8x32xf32>
    %cst_9 = arith.constant dense<0.000000e+00> : vector<4x8xf32>
    %14 = vector.multi_reduction <add>, %13, %cst_9 [2] : vector<4x8x32xf32> to vector<4x8xf32>
    %15 = vector.shape_cast %14 : vector<4x8xf32> to vector<4x8x1xf32>
    %cst_10 = arith.constant dense<0xFF800000> : vector<4x1xf32>
    %16 = vector.multi_reduction <maximumf>, %15, %cst_10 [1] : vector<4x8x1xf32> to vector<4x1xf32>
    %17 = vector.shape_cast %16 : vector<4x1xf32> to vector<4x1x1xf32>
    %18 = vector.broadcast %17 : vector<4x1x1xf32> to vector<4x8x1xf32>
    %19 = arith.subf %15, %18 : vector<4x8x1xf32>
    %20 = math.exp %19 : vector<4x8x1xf32>
    %cst_11 = arith.constant dense<0.000000e+00> : vector<4x1xf32>
    %21 = vector.multi_reduction <add>, %20, %cst_11 [1] : vector<4x8x1xf32> to vector<4x1xf32>
    %22 = vector.shape_cast %21 : vector<4x1xf32> to vector<4x1x1xf32>
    %23 = vector.broadcast %20 : vector<4x8x1xf32> to vector<4x8x32xf32>
    %24 = arith.mulf %9, %23 : vector<4x8x32xf32>
    %cst_12 = arith.constant dense<0.000000e+00> : vector<4x32xf32>
    %25 = vector.multi_reduction <add>, %24, %cst_12 [1] : vector<4x8x32xf32> to vector<4x32xf32>
    %26 = vector.shape_cast %22 : vector<4x1x1xf32> to vector<4x1xf32>
    %27 = tpu.reciprocal %26 {approx = true} : vector<4x1xf32> -> vector<4x1xf32>
    %28 = vector.broadcast %27 : vector<4x1xf32> to vector<4x32xf32>
    %29 = arith.mulf %25, %28 : vector<4x32xf32>
    %c0_13 = arith.constant 0 : index
    %c0_14 = arith.constant 0 : index
    %30 = vector.load %arg5[%c0_13, %c0_14] : memref<32x8xf32, #tpu.memory_space<vmem>>, vector<32x8xf32>
    %cst_15 = arith.constant dense<0.000000e+00> : vector<4x8xf32>
    %31 = tpu.matmul %29, %30, %cst_15 {dimension_numbers = #tpu.dot_dimension_numbers<[1], [0], [0], [1], [0, 0, 1, 1], [], []>} : vector<4x32xf32>, vector<32x8xf32>, vector<4x8xf32> -> vector<4x8xf32>
    %c0_16 = arith.constant 0 : index
    %c0_17 = arith.constant 0 : index
    %32 = vector.load %arg6[%c0_16, %c0_17] : memref<1x8xf32, #tpu.memory_space<vmem>>, vector<1x8xf32>
    %33 = vector.broadcast %32 : vector<1x8xf32> to vector<4x8xf32>
    %34 = arith.addf %31, %33 : vector<4x8xf32>
    %c0_18 = arith.constant 0 : index
    %c0_19 = arith.constant 0 : index
    %35 = vector.load %arg7[%c0_18, %c0_19] : memref<4x8xf32, #tpu.memory_space<vmem>>, vector<4x8xf32>
    tpu.vector_store %arg7[%c0_18, %c0_19], %34 {strides = array<i32>} : memref<4x8xf32, #tpu.memory_space<vmem>>, vector<4x8xf32>,
    return
  }
  func.func @transform_0(%arg0: i32) -> (i32, i32, i32) {
    %c0_i32 = arith.constant 0 : i32
    %c0_i32_0 = arith.constant 0 : i32
    %c0_i32_1 = arith.constant 0 : i32
    return %arg0, %c0_i32, %c0_i32_0 : i32, i32, i32
  }
  func.func @transform_1(%arg0: i32) -> (i32, i32) {
    %c0_i32 = arith.constant 0 : i32
    %c0_i32_0 = arith.constant 0 : i32
    %c0_i32_1 = arith.constant 0 : i32
    return %c0_i32, %c0_i32_0 : i32, i32
  }
  func.func @transform_2(%arg0: i32) -> (i32, i32) {
    %c0_i32 = arith.constant 0 : i32
    %c0_i32_0 = arith.constant 0 : i32
    %c0_i32_1 = arith.constant 0 : i32
    return %c0_i32, %c0_i32_0 : i32, i32
  }
  func.func @transform_3(%arg0: i32) -> (i32, i32) {
    %c0_i32 = arith.constant 0 : i32
    %c0_i32_0 = arith.constant 0 : i32
    %c0_i32_1 = arith.constant 0 : i32
    return %c0_i32, %c0_i32_0 : i32, i32
  }
  func.func @transform_4(%arg0: i32) -> (i32, i32) {
    %c0_i32 = arith.constant 0 : i32
    %c0_i32_0 = arith.constant 0 : i32
    %c0_i32_1 = arith.constant 0 : i32
    return %c0_i32, %c0_i32_0 : i32, i32
  }
  func.func @transform_5(%arg0: i32) -> (i32, i32) {
    %c0_i32 = arith.constant 0 : i32
    %c0_i32_0 = arith.constant 0 : i32
    %c0_i32_1 = arith.constant 0 : i32
    return %c0_i32, %c0_i32_0 : i32, i32
  }
  func.func @transform_6(%arg0: i32) -> (i32, i32) {
    %c0_i32 = arith.constant 0 : i32
    %c0_i32_0 = arith.constant 0 : i32
    return %arg0, %c0_i32 : i32, i32
  }
}

</mosaic_0001>

<llo_original>
// kernel: tpu_custom_call.1
$region0: #{tpu_custom_call.1}
  #allocation0 [shape = 'u32[]', space=smem, size = 0x4, offset = 0x4, fixed_abs, tag = 'smem constant byte address 0x4 - core index']
  #allocation1 [shape = 'u32[144,128]{1,0:T(1,128)}', space=vmem, size = 0x12000, scoped, tag = 'internal scratch']
  %s0 = inlined_call_operand.vmem [shape: f32[4,8,16], index: 0, kind: input, shape index: {}]
  %s1 = inlined_call_operand.hbm [shape: f32[16,32], index: 1, kind: input, shape index: {}]
  %s2 = inlined_call_operand.vmem [shape: f32[1,32], index: 2, kind: input, shape index: {}]
  %s3 = inlined_call_operand.vmem [shape: f32[1,32], index: 3, kind: input, shape index: {}]
  %s4 = inlined_call_operand.vmem [shape: f32[32,8], index: 4, kind: input, shape index: {}]
  %s5 = inlined_call_operand.vmem [shape: f32[1,8], index: 5, kind: input, shape index: {}]
  %s6 = inlined_call_operand.hbm [shape: f32[4,8], index: 6, kind: output, shape index: {}]
  %s7 = sld [smem:[#allocation0]]
  $region38: #{tpu_custom_call.1} parent=0
    _
  %s9 = ssub.s32 1, %s7
  %s10 = scalar_select 0, %s9, %s7
  $region1: #{tpu_custom_call.1} parent=0
    #allocation2 [shape = 'u8[8192]{0}', space=vmem, size = 0x2000, scoped, tag = 'input window, operand 1, single buffered']
    #allocation3 [shape = 's32[1]{0}', space=sflag, size = 0x4, scoped, tag = 'scoped memory for tpu_custom_call.1']
    #allocation4 [shape = 's32[1]{0}', space=sflag, size = 0x4, scoped, tag = 'scoped memory for tpu_custom_call.1']
    #allocation5 [shape = 'u8[2048]{0}', space=vmem, size = 0x800, scoped, tag = 'output window, operand 0, single buffered']
    %11 = vsyncpa [#allocation3], 0
    %12 = vsyncpa [#allocation4], 0
    // Predicated region
    $region2: #{tpu_custom_call.1} parent=1 // pred_check
      _
    $region3: #{tpu_custom_call.1} parent=1 // pred_check_branch
      %14 = sbr.rel (0) target = $region5
    $region4: #{tpu_custom_call.1} parent=1 // pred_region
      _
    $region5: #{tpu_custom_call.1} parent=1 // pred_fallthru
      _
    // Predicated region
    $region6: #{tpu_custom_call.1} parent=1 // pred_check
      _
    $region7: #{tpu_custom_call.1} parent=1 // pred_check_branch
      %16 = sbr.rel (0) target = $region9
    $region8: #{tpu_custom_call.1} parent=1 // pred_region
      %s18 = ssub.s32 256, 256
      %19 = vsyncadd [#allocation3], %s18
      %s20 = sshll.u32 [#allocation2], 4
      %s21 = int_to_ptr.vmem [resolvable:$true] %s20
      %26 = dma.hbm_to_vmem [thread:$0]  %s1, 256, %s21, [#allocation3], 128, 128, 8
    $region9: #{tpu_custom_call.1} parent=1 // pred_fallthru
      _
    // Predicated region
    $region10: #{tpu_custom_call.1} parent=1 // pred_check
      _
    $region11: #{tpu_custom_call.1} parent=1 // pred_check_branch
      %28 = sbr.rel (0) target = $region13
    $region12: #{tpu_custom_call.1} parent=1 // pred_region
      _
    $region13: #{tpu_custom_call.1} parent=1 // pred_fallthru
      _
    // Predicated region
    $region14: #{tpu_custom_call.1} parent=1 // pred_check
      _
    $region15: #{tpu_custom_call.1} parent=1 // pred_check_branch
      %30 = sbr.rel (0) target = $region17
    $region16: #{tpu_custom_call.1} parent=1 // pred_region
      _
    $region17: #{tpu_custom_call.1} parent=1 // pred_fallthru
      _
    // Predicated region
    $region18: #{tpu_custom_call.1} parent=1 // pred_check
      _
    $region19: #{tpu_custom_call.1} parent=1 // pred_check_branch
      %32 = sbr.rel (0) target = $region21
    $region20: #{tpu_custom_call.1} parent=1 // pred_region
      _
    $region21: #{tpu_custom_call.1} parent=1 // pred_fallthru
      _
    // Predicated region
    $region22: #{tpu_custom_call.1} parent=1 // pred_check
      _
    $region23: #{tpu_custom_call.1} parent=1 // pred_check_branch
      %34 = sbr.rel (0) target = $region25
    $region24: #{tpu_custom_call.1} parent=1 // pred_region
      _
    $region25: #{tpu_custom_call.1} parent=1 // pred_fallthru
      _
    // Predicated region
    $region26: #{tpu_custom_call.1} parent=1 // pred_check
      _
    $region27: #{tpu_custom_call.1} parent=1 // pred_check_branch
      %36 = sbr.rel (0) target = $region29
    $region28: #{tpu_custom_call.1} parent=1 // pred_region
      %37 = dma.done [#allocation3], 256
    $region29: #{tpu_custom_call.1} parent=1 // pred_fallthru
      _
    %v38 = vld [vmem:[%s0] sm:$0xff]
    %v39 = vld [vmem:[%s0 + $0x8] sm:$0xff]
    %v40 = vld [vmem:[%s0 + $0x10] sm:$0xff]
    %v41 = vld [vmem:[%s0 + $0x18] sm:$0xff]
    %v42 = vld [vmem:[#allocation2] sm:$0xff]
    %v43 = vld [vmem:[#allocation2 + $0x8] sm:$0xff]
    %v44 = vld [vmem:[%s2] sm:$0x1]
    %v46 = vlaneseq
    %v47 = vshrl.u32 %v46, 7
    %v48 = vsub.s32 0, %v47
    %v49 = vrot.slane %v44, %v48
    %vm51 = vcmask 130048
    %v53 = vsel %vm51, %v38, 0
    %v56 = vsel %vm51, %v39, 0
    %v59 = vsel %vm51, %v40, 0
    %v62 = vsel %vm51, %v41, 0
    %64 = vmatprep.subr.mxu0 0.0
    %65 = vmatpush1.msra.mxu0 0.0
    %66 = vmatprep.subr.mxu0 0.0
    %67 = vmatpush1.msra.mxu0 0.0
    %68 = vmatprep.subr.mxu0 0.0
    %69 = vmatpush1.msra.mxu0 0.0
    %70 = vmatprep.subr.mxu0 0.0
    %71 = vmatpush1.msra.mxu0 0.0
    %72 = vmatprep.subr.mxu0 0.0
    %73 = vmatpush1.msra.mxu0 0.0
    %74 = vmatprep.subr.mxu0 0.0
    %75 = vmatpush1.msra.mxu0 0.0
    %76 = vmatprep.subr.mxu0 0.0
    %77 = vmatpush1.msra.mxu0 0.0
    %78 = vmatprep.subr.mxu0 0.0
    %79 = vmatpush1.msra.mxu0 0.0
    %80 = vmatprep.subr.mxu0 0.0
    %81 = vmatpush1.msra.mxu0 0.0
    %82 = vmatprep.subr.mxu0 0.0
    %83 = vmatpush1.msra.mxu0 0.0
    %84 = vmatprep.subr.mxu0 0.0
    %85 = vmatpush1.msra.mxu0 0.0
    %86 = vmatprep.subr.mxu0 0.0
    %87 = vmatpush1.msra.mxu0 0.0
    %88 = vmatprep.subr.mxu0 0.0
    %89 = vmatpush1.msra.mxu0 0.0
    %90 = vmatprep.subr.mxu0 0.0
    %91 = vmatpush1.msra.mxu0 0.0
    %92 = vmatprep.subr.mxu0 0.0
    %93 = vmatpush1.msra.mxu0 %v43
    %94 = vmatprep.subr.mxu0 0.0
    %95 = vmatpush1.msra.mxu0 %v42
    %96 = vmatprep.subr.mxu0 0.0
    %97 = vmatpush2.msra.mxu0 0.0
    %98 = vmatprep.subr.mxu0 0.0
    %99 = vmatpush2.msra.mxu0 0.0
    %100 = vmatprep.subr.mxu0 0.0
    %101 = vmatpush2.msra.mxu0 0.0
    %102 = vmatprep.subr.mxu0 0.0
    %103 = vmatpush2.msra.mxu0 0.0
    %104 = vmatprep.subr.mxu0 0.0
    %105 = vmatpush2.msra.mxu0 0.0
    %106 = vmatprep.subr.mxu0 0.0
    %107 = vmatpush2.msra.mxu0 0.0
    %108 = vmatprep.subr.mxu0 0.0
    %109 = vmatpush2.msra.mxu0 0.0
    %110 = vmatprep.subr.mxu0 0.0
    %111 = vmatpush2.msra.mxu0 0.0
    %112 = vmatprep.subr.mxu0 0.0
    %113 = vmatpush2.msra.mxu0 0.0
    %114 = vmatprep.subr.mxu0 0.0
    %115 = vmatpush2.msra.mxu0 0.0
    %116 = vmatprep.subr.mxu0 0.0
    %117 = vmatpush2.msra.mxu0 0.0
    %118 = vmatprep.subr.mxu0 0.0
    %119 = vmatpush2.msra.mxu0 0.0
    %120 = vmatprep.subr.mxu0 0.0
    %121 = vmatpush2.msra.mxu0 0.0
    %122 = vmatprep.subr.mxu0 0.0
    %123 = vmatpush2.msra.mxu0 0.0
    %124 = vmatprep.subr.mxu0 0.0
    %125 = vmatpush2.msra.mxu0 0.0
    %126 = vmatprep.subr.mxu0 0.0
    %127 = vmatpush2.msra.mxu0 0.0
    %128 = vmatprep.mubr.f32.mxu0 0.0
    %129 = vmatmul.mubr.f32.gmra.mxu0 %v53
    %v130 = vpop.f32.mrf.mxu0
    %v131 = vadd.f32 %v49, %v130
    %v132 = vpop.f32.mrf.mxu0
    %133 = vmatprep.mubr.f32.mxu0 0.0
    %134 = vmatmul.mubr.f32.gmra.mxu0 %v56
    %v135 = vpop.f32.mrf.mxu0
    %v136 = vadd.f32 %v49, %v135
    %v137 = vpop.f32.mrf.mxu0
    %138 = vmatprep.mubr.f32.mxu0 0.0
    %139 = vmatmul.mubr.f32.gmra.mxu0 %v59
    %v140 = vpop.f32.mrf.mxu0
    %v141 = vadd.f32 %v49, %v140
    %v142 = vpop.f32.mrf.mxu0
    %143 = vmatprep.mubr.f32.mxu0 0.0
    %144 = vmatmul.mubr.f32.gmra.mxu0 %v62
    %v145 = vpop.f32.mrf.mxu0
    %v146 = vadd.f32 %v49, %v145
    %v147 = vpop.f32.mrf.mxu0
    %148 = vdwg.mxu0
    %v149 = vmax.f32 %v131, 0.0
    %v150 = vmax.f32 %v136, 0.0
    %v151 = vmax.f32 %v141, 0.0
    %v152 = vmax.f32 %v146, 0.0
    %v153 = vld [vmem:[%s3] sm:$0x1]
    %v155 = vlaneseq
    %v156 = vshrl.u32 %v155, 7
    %v157 = vsub.s32 0, %v156
    %v158 = vrot.slane %v153, %v157
    %v160 = vmul.f32 %v149, %v158
    %v161 = vmul.f32 %v150, %v158
    %v162 = vmul.f32 %v151, %v158
    %v163 = vmul.f32 %v152, %v158
    %vm164 = vcmask 261120
    %v165 = vsel %vm164, %v160, 0.0
    %166 = vadd.xlane.f32.xlu0 %v165
    %v167 = vpop.xlane.xlu0 %166
    %v168 = vsel %vm164, %v161, 0.0
    %169 = vadd.xlane.f32.xlu0 %v168
    %v170 = vpop.xlane.xlu0 %169
    %v171 = vsel %vm164, %v162, 0.0
    %172 = vadd.xlane.f32.xlu0 %v171
    %v173 = vpop.xlane.xlu0 %172
    %v174 = vsel %vm164, %v163, 0.0
    %175 = vadd.xlane.f32.xlu0 %v174
    %v176 = vpop.xlane.xlu0 %175
    %v177 = vrot.slane %v167, 4
    %v178 = vmax.f32 %v167, %v177
    %v179 = vrot.slane %v178, 2
    %v180 = vmax.f32 %v178, %v179
    %v181 = vrot.slane %v180, 1
    %v182 = vmax.f32 %v180, %v181
    %v183 = vrot.slane %v170, 4
    %v184 = vmax.f32 %v170, %v183
    %v185 = vrot.slane %v184, 2
    %v186 = vmax.f32 %v184, %v185
    %v187 = vrot.slane %v186, 1
    %v188 = vmax.f32 %v186, %v187
    %v189 = vrot.slane %v173, 4
    %v190 = vmax.f32 %v173, %v189
    %v191 = vrot.slane %v190, 2
    %v192 = vmax.f32 %v190, %v191
    %v193 = vrot.slane %v192, 1
    %v194 = vmax.f32 %v192, %v193
    %v195 = vrot.slane %v176, 4
    %v196 = vmax.f32 %v176, %v195
    %v197 = vrot.slane %v196, 2
    %v198 = vmax.f32 %v196, %v197
    %v199 = vrot.slane %v198, 1
    %v200 = vmax.f32 %v198, %v199
    %v201 = vsub.f32 %v167, %v182
    %v202 = vsub.f32 %v170, %v188
    %v203 = vsub.f32 %v173, %v194
    %v204 = vsub.f32 %v176, %v200
    %v205 = vmul.f32 %v201, 1.442695
    %v206 = vpow.pop %v205
    %v207 = vmul.f32 %v202, 1.442695
    %v208 = vpow.pop %v207
    %v209 = vmul.f32 %v203, 1.442695
    %v210 = vpow.pop %v209
    %v211 = vmul.f32 %v204, 1.442695
    %v212 = vpow.pop %v211
    %v213 = vrot.slane %v206, 4
    %v214 = vadd.f32 %v206, %v213
    %v215 = vrot.slane %v214, 2
    %v216 = vadd.f32 %v214, %v215
    %v217 = vrot.slane %v216, 1
    %v218 = vadd.f32 %v216, %v217
    %v219 = vrot.slane %v208, 4
    %v220 = vadd.f32 %v208, %v219
    %v221 = vrot.slane %v220, 2
    %v222 = vadd.f32 %v220, %v221
    %v223 = vrot.slane %v222, 1
    %v224 = vadd.f32 %v222, %v223
    %v225 = vrot.slane %v210, 4
    %v226 = vadd.f32 %v210, %v225
    %v227 = vrot.slane %v226, 2
    %v228 = vadd.f32 %v226, %v227
    %v229 = vrot.slane %v228, 1
    %v230 = vadd.f32 %v228, %v229
    %v231 = vrot.slane %v212, 4
    %v232 = vadd.f32 %v212, %v231
    %v233 = vrot.slane %v232, 2
    %v234 = vadd.f32 %v232, %v233
    %v235 = vrot.slane %v234, 1
    %v236 = vadd.f32 %v234, %v235
    %v237 = vmul.f32 %v149, %v206
    %v238 = vmul.f32 %v150, %v208
    %v239 = vmul.f32 %v151, %v210
    %v240 = vmul.f32 %v152, %v212
    %v241 = vsel %vm164, %v237, 0.0
    %v242 = vrot.slane %v241, 4
    %v243 = vadd.f32 %v241, %v242
    %v244 = vrot.slane %v243, 2
    %v245 = vadd.f32 %v243, %v244
    %v246 = vrot.slane %v245, 1
    %v247 = vadd.f32 %v245, %v246
    %v248 = vsel %vm164, %v238, 0.0
    %v249 = vrot.slane %v248, 4
    %v250 = vadd.f32 %v248, %v249
    %v251 = vrot.slane %v250, 2
    %v252 = vadd.f32 %v250, %v251
    %v253 = vrot.slane %v252, 1
    %v254 = vadd.f32 %v252, %v253
    %v255 = vsel %vm164, %v239, 0.0
    %v256 = vrot.slane %v255, 4
    %v257 = vadd.f32 %v255, %v256
    %v258 = vrot.slane %v257, 2
    %v259 = vadd.f32 %v257, %v258
    %v260 = vrot.slane %v259, 1
    %v261 = vadd.f32 %v259, %v260
    %v262 = vsel %vm164, %v240, 0.0
    %v263 = vrot.slane %v262, 4
    %v264 = vadd.f32 %v262, %v263
    %v265 = vrot.slane %v264, 2
    %v266 = vadd.f32 %v264, %v265
    %v267 = vrot.slane %v266, 1
    %v268 = vadd.f32 %v266, %v267
    %v269 = vrcp.pop %v218
    %v270 = vrcp.pop %v224
    %v271 = vrcp.pop %v230
    %v272 = vrcp.pop %v236
    %v273 = vmul.f32 %v247, %v269
    %v274 = vmul.f32 %v254, %v270
    %v275 = vmul.f32 %v261, %v271
    %v276 = vmul.f32 %v268, %v272
    %v277 = vld [vmem:[%s4] sm:$0xff]
    %v278 = vld [vmem:[%s4 + $0x8] sm:$0xff]
    %v279 = vld [vmem:[%s4 + $0x10] sm:$0xff]
    %v280 = vld [vmem:[%s4 + $0x18] sm:$0xff]
    %v281 = vld [vmem:[%s5] sm:$0x1]
    %v283 = vlaneseq
    %v284 = vshrl.u32 %v283, 7
    %v285 = vsub.s32 0, %v284
    %v286 = vrot.slane %v281, %v285
    %vm292 = vcmask 1041409
    %v293 = vsel %vm292, %v274, %v273
    %vm294 = vcmask 1042434
    %v295 = vsel %vm294, %v275, %v293
    %vm296 = vcmask 1043459
    %v297 = vsel %vm296, %v276, %v295
    %v298 = vsel %vm164, %v297, 0
    %300 = vmatprep.subr.mxu0 0.0
    %301 = vmatpush1.msra.mxu0 0.0
    %302 = vmatprep.subr.mxu0 0.0
    %303 = vmatpush1.msra.mxu0 0.0
    %304 = vmatprep.subr.mxu0 0.0
    %305 = vmatpush1.msra.mxu0 0.0
    %306 = vmatprep.subr.mxu0 0.0
    %307 = vmatpush1.msra.mxu0 0.0
    %308 = vmatprep.subr.mxu0 0.0
    %309 = vmatpush1.msra.mxu0 0.0
    %310 = vmatprep.subr.mxu0 0.0
    %311 = vmatpush1.msra.mxu0 0.0
    %312 = vmatprep.subr.mxu0 0.0
    %313 = vmatpush1.msra.mxu0 0.0
    %314 = vmatprep.subr.mxu0 0.0
    %315 = vmatpush1.msra.mxu0 0.0
    %316 = vmatprep.subr.mxu0 0.0
    %317 = vmatpush1.msra.mxu0 0.0
    %318 = vmatprep.subr.mxu0 0.0
    %319 = vmatpush1.msra.mxu0 0.0
    %320 = vmatprep.subr.mxu0 0.0
    %321 = vmatpush1.msra.mxu0 0.0
    %322 = vmatprep.subr.mxu0 0.0
    %323 = vmatpush1.msra.mxu0 0.0
    %324 = vmatprep.subr.mxu0 0.0
    %325 = vmatpush1.msra.mxu0 %v280
    %326 = vmatprep.subr.mxu0 0.0
    %327 = vmatpush1.msra.mxu0 %v279
    %328 = vmatprep.subr.mxu0 0.0
    %329 = vmatpush1.msra.mxu0 %v278
    %330 = vmatprep.subr.mxu0 0.0
    %331 = vmatpush1.msra.mxu0 %v277
    %332 = vmatprep.subr.mxu0 0.0
    %333 = vmatpush2.msra.mxu0 0.0
    %334 = vmatprep.subr.mxu0 0.0
    %335 = vmatpush2.msra.mxu0 0.0
    %336 = vmatprep.subr.mxu0 0.0
    %337 = vmatpush2.msra.mxu0 0.0
    %338 = vmatprep.subr.mxu0 0.0
    %339 = vmatpush2.msra.mxu0 0.0
    %340 = vmatprep.subr.mxu0 0.0
    %341 = vmatpush2.msra.mxu0 0.0
    %342 = vmatprep.subr.mxu0 0.0
    %343 = vmatpush2.msra.mxu0 0.0
    %344 = vmatprep.subr.mxu0 0.0
    %345 = vmatpush2.msra.mxu0 0.0
    %346 = vmatprep.subr.mxu0 0.0
    %347 = vmatpush2.msra.mxu0 0.0
    %348 = vmatprep.subr.mxu0 0.0
    %349 = vmatpush2.msra.mxu0 0.0
    %350 = vmatprep.subr.mxu0 0.0
    %351 = vmatpush2.msra.mxu0 0.0
    %352 = vmatprep.subr.mxu0 0.0
    %353 = vmatpush2.msra.mxu0 0.0
    %354 = vmatprep.subr.mxu0 0.0
    %355 = vmatpush2.msra.mxu0 0.0
    %356 = vmatprep.subr.mxu0 0.0
    %357 = vmatpush2.msra.mxu0 0.0
    %358 = vmatprep.subr.mxu0 0.0
    %359 = vmatpush2.msra.mxu0 0.0
    %360 = vmatprep.subr.mxu0 0.0
    %361 = vmatpush2.msra.mxu0 0.0
    %362 = vmatprep.subr.mxu0 0.0
    %363 = vmatpush2.msra.mxu0 0.0
    %364 = vmatprep.mubr.f32.mxu0 0.0
    %365 = vmatmul.mubr.f32.gmra.mxu0 %v298
    %v366 = vpop.f32.mrf.mxu0
    %v367 = vadd.f32 %v286, %v366
    %v368 = vpop.f32.mrf.mxu0
    %369 = vdwg.mxu0
    %vm370 = vcmask 60416
    %371 = vst.msk [vmem:[#allocation5] sm:$0xf] %vm370, %v367
    // Predicated region
    $region30: #{tpu_custom_call.1} parent=1 // pred_check
      _
    $region31: #{tpu_custom_call.1} parent=1 // pred_check_branch
      %373 = sbr.rel (0) target = $region33
    $region32: #{tpu_custom_call.1} parent=1 // pred_region
      %s375 = ssub.s32 64, 64
      %376 = vsyncadd [#allocation4], %s375
      %s378 = sshll.u32 [#allocation5], 4
      %s379 = int_to_ptr.vmem [resolvable:$true] %s378
      %381 = dma.vmem_to_hbm [thread:$0]  %s379, 64, %s6, [#allocation4]
    $region33: #{tpu_custom_call.1} parent=1 // pred_fallthru
      _
    // Predicated region
    $region34: #{tpu_custom_call.1} parent=1 // pred_check
      _
    $region35: #{tpu_custom_call.1} parent=1 // pred_check_branch
      %383 = sbr.rel (0) target = $region37
    $region36: #{tpu_custom_call.1} parent=1 // pred_region
      %384 = dma.done [#allocation4], 64
    $region37: #{tpu_custom_call.1} parent=1 // pred_fallthru
      _
    %385 = vsyncpa [#allocation3], 1
    %386 = vsyncpa [#allocation4], 1

</llo_original>
